<compile_context>
chip_gen: v6e
topology: v6e:2x2x1
jax: 0.10.0
libtpu: 0.0.40
codegen_flags: <defaults>
</compile_context>

<pallas_src>
import jax
import jax.numpy as jnp
from jax.experimental import pallas as pl
from jax.experimental.pallas import tpu as pltpu


def _round_up(n, m):
    return ((n + m - 1) // m) * m


def _block_diag(w, p):
    """block_diag(w, ..., w) with p copies (pure outer product with identity -> exact)."""
    fin, fout = w.shape
    eye = jnp.eye(p, dtype=w.dtype)
    return jnp.einsum("ij,kl->ikjl", eye, w).reshape(p * fin, p * fout)


def _pack_factor():
    """Batch rows packed per MXU pass: fill the contraction depth of the local MXU."""
    try:
        kind = jax.devices()[0].device_kind.lower()
    except Exception:
        kind = ""
    # v6e / v7x MXUs are 256 deep -> pack 8; v5e (and older) are 128 deep -> pack 4.
    return 8 if ("v6" in kind or "v7" in kind) else 4


def dz_kernel(x_ref, w1_ref, b1_ref, w2_ref, b2_ref, w3_ref, b3_ref, o_ref):
    # fc1: cast x to bf16 in-kernel (VPU, free), bf16 x bf16 -> f32 accumulate on the MXU.
    x = x_ref[...].astype(jnp.bfloat16)
    h1 = jnp.dot(x, w1_ref[...], preferred_element_type=jnp.float32)
    h1 = jnp.maximum(h1 + b1_ref[...], 0.0)
    # fc2 (bf16 operands, f32 accumulate; bias + ReLU in f32).
    h2 = jnp.dot(h1.astype(jnp.bfloat16), w2_ref[...], preferred_element_type=jnp.float32)
    h2 = jnp.maximum(h2 + b2_ref[...], 0.0)
    # fc3 + sigmoid (f32 elementwise / EUP exp).
    z = jnp.dot(h2.astype(jnp.bfloat16), w3_ref[...], preferred_element_type=jnp.float32)
    z = z + b3_ref[...]
    o_ref[...] = (1.0 / (1.0 + jnp.exp(-z))).astype(o_ref.dtype)


def d_z_forward(x, params, tile_b=4096, pack=None):
    """x: (B, latent_dim) f32; params: dict of (in,out) weights, (1,out) biases.

    Returns sigmoid(fc3(relu(fc2(relu(fc1(x)))))) with shape (B, 1) float32.
    """
    B, latent_dim = x.shape
    P = _pack_factor() if pack is None else pack

    # Block-diagonal packed weights (tiny, exact; constant-folded / cached under jit).
    w1 = _block_diag(params["w1"].astype(jnp.bfloat16), P)    # (P*L,  P*H1)
    w2 = _block_diag(params["w2"].astype(jnp.bfloat16), P)    # (P*H1, P*H2)
    w3 = _block_diag(params["w3"].astype(jnp.bfloat16), P)    # (P*H2, P)
    b1 = jnp.tile(params["b1"].astype(jnp.float32), (1, P))   # (1, P*H1)
    b2 = jnp.tile(params["b2"].astype(jnp.float32), (1, P))   # (1, P*H2)
    b3 = jnp.tile(params["b3"].astype(jnp.float32), (1, P))   # (1, P)

    # Pack P consecutive batch rows per packed row.  Only pad when B % P != 0.
    B_pad = _round_up(B, P)
    if B_pad != B:
        # TODO(synk): full copy of x; at very large B with B % P != 0, pad upstream instead.
        x = jnp.pad(x, ((0, B_pad - B), (0, 0)))
    Bp = B_pad // P
    xp = x.reshape(Bp, P * latent_dim)   # contiguous row-major -> free reshape, stays f32

    # Sublane-aligned packed-row tile; ragged last tile handled by the cdiv grid
    # (out-of-bounds rows hold garbage, flow through independently, and are sliced off).
    tile_bp = min(_round_up(max(tile_b // P, 8), 8), _round_up(Bp, 8))
    grid = (pl.cdiv(Bp, tile_bp),)

    def resident(arr):
        # Full-array block, constant index map -> DMA'd once, VMEM-resident across the grid.
        return pl.BlockSpec(arr.shape, lambda i: (0, 0))

    out = pl.pallas_call(
        dz_kernel,
        out_shape=jax.ShapeDtypeStruct((Bp, P), jnp.float32),
        grid=grid,
        in_specs=[
            pl.BlockSpec((tile_bp, P * latent_dim), lambda i: (i, 0)),  # x: streamed per tile
            resident(w1), resident(b1),
            resident(w2), resident(b2),
            resident(w3), resident(b3),
        ],
        out_specs=pl.BlockSpec((tile_bp, P), lambda i: (i, 0)),
        compiler_params=pltpu.CompilerParams(
            # Batch tiles are independent -> megacore sharding on multi-TC parts (v7x).
            dimension_semantics=("parallel",),
            # Explicit budget: well under v7x's 64 MiB physical VMEM, plenty for the
            # double-buffered ~0.5 MiB x tiles + resident weights used here.
            vmem_limit_bytes=32 * 1024 * 1024,
        ),
    )(xp, w1, b1, w2, b2, w3, b3)

    # Packed row i, column j == batch row i*P + j -> row-major reshape restores order (free).
    return out.reshape(B_pad, 1)[:B]


def init_params(key, latent_dim):
    """Deterministic init mimicking nn.Linear's U(-1/sqrt(fan_in), 1/sqrt(fan_in))."""
    h1 = latent_dim // 2
    h2 = latent_dim // 3
    dims = [(latent_dim, h1), (h1, h2), (h2, 1)]
    params = {}
    keys = jax.random.split(key, 2 * len(dims))
    for i, (fin, fout) in enumerate(dims):
        bound = 1.0 / (fin ** 0.5)
        params[f"w{i+1}"] = jax.random.uniform(
            keys[2 * i], (fin, fout), jnp.float32, minval=-bound, maxval=bound
        )
        params[f"b{i+1}"] = jax.random.uniform(
            keys[2 * i + 1], (1, fout), jnp.float32, minval=-bound, maxval=bound
        )
    return params


def _sigmoid(z):
    return 1.0 / (1.0 + jnp.exp(-z))


def d_z_reference_mixed(x, params):
    """Mirrors the kernel's precision: bf16 matmul operands, f32 accumulate/elementwise."""
    h1 = jnp.dot(x.astype(jnp.bfloat16), params["w1"].astype(jnp.bfloat16),
                 preferred_element_type=jnp.float32)
    h1 = jnp.maximum(h1 + params["b1"], 0.0)
    h2 = jnp.dot(h1.astype(jnp.bfloat16), params["w2"].astype(jnp.bfloat16),
                 preferred_element_type=jnp.float32)
    h2 = jnp.maximum(h2 + params["b2"], 0.0)
    z = jnp.dot(h2.astype(jnp.bfloat16), params["w3"].astype(jnp.bfloat16),
                preferred_element_type=jnp.float32) + params["b3"]
    return _sigmoid(z)


def d_z_reference_f32(x, params):
    """Pure f32 reference matching the original PyTorch module exactly."""
    h1 = jnp.maximum(x @ params["w1"] + params["b1"], 0.0)
    h2 = jnp.maximum(h1 @ params["w2"] + params["b2"], 0.0)
    return _sigmoid(h2 @ params["w3"] + params["b3"])


if __name__ == "__main__":
    latent_dim = 32   # -> fc1: 32->16, fc2: 16->10, fc3: 10->1
    batch = 8

    key = jax.random.PRNGKey(0)
    k_x, k_p = jax.random.split(key)
    x = jax.random.normal(k_x, (batch, latent_dim), dtype=jnp.float32)
    params = init_params(k_p, latent_dim)

    out = jax.block_until_ready(d_z_forward(x, params))
    ref = d_z_reference_mixed(x, params)
    ref_f32 = d_z_reference_f32(x, params)

    assert out.shape == (batch, 1)
    assert jnp.allclose(out, ref, atol=1e-4, rtol=1e-4), "mismatch vs mixed-precision ref"
    assert jnp.allclose(out, ref_f32, atol=5e-2), "mismatch vs f32 ref beyond bf16 budget"

    # Multi-tile grid + ragged last tile + pack-alignment padding (B=130 not a multiple of 8).
    x2 = jax.random.normal(jax.random.PRNGKey(1), (130, latent_dim), dtype=jnp.float32)
    out2 = jax.block_until_ready(d_z_forward(x2, params, tile_b=64))
    ref2 = d_z_reference_mixed(x2, params)
    assert out2.shape == (130, 1)
    assert jnp.allclose(out2, ref2, atol=1e-4, rtol=1e-4), "multi-tile/ragged path mismatch"

    # Explicit pack=4 path (v5e-style 128-deep MXU packing) on the same ragged batch.
    out3 = jax.block_until_ready(d_z_forward(x2, params, tile_b=64, pack=4))
    assert jnp.allclose(out3, ref2, atol=1e-4, rtol=1e-4), "pack=4 path mismatch"

    print("KERNEL_OK")
</pallas_src>

<mosaic_0001>
module attributes {stable_mosaic.version = 11 : i64} {
  func.func @dz_kernel(%arg0: i32, %arg1: memref<8x128xf32, #tpu.memory_space<vmem>>, %arg2: memref<128x64xbf16, #tpu.memory_space<vmem>>, %arg3: memref<1x64xf32, #tpu.memory_space<vmem>>, %arg4: memref<64x40xbf16, #tpu.memory_space<vmem>>, %arg5: memref<1x40xf32, #tpu.memory_space<vmem>>, %arg6: memref<40x4xbf16, #tpu.memory_space<vmem>>, %arg7: memref<1x4xf32, #tpu.memory_space<vmem>>, %arg8: memref<8x4xf32, #tpu.memory_space<vmem>>) attributes {dimension_semantics = [#tpu.dimension_semantics<parallel>], iteration_bounds = array<i64: 1>, scalar_prefetch = 0 : i64, scratch_operands = 0 : i64, tpu.core_type = #tpu.core_type<tc>, window_params = [{transform_indices = @transform_0, window_bounds = array<i64: 8, 128>}, {pipeline_mode = #tpu.pipeline_mode<synchronous>, transform_indices = @transform_1, window_bounds = array<i64: 128, 64>}, {pipeline_mode = #tpu.pipeline_mode<synchronous>, transform_indices = @transform_2, window_bounds = array<i64: 1, 64>}, {pipeline_mode = #tpu.pipeline_mode<synchronous>, transform_indices = @transform_3, window_bounds = array<i64: 64, 40>}, {pipeline_mode = #tpu.pipeline_mode<synchronous>, transform_indices = @transform_4, window_bounds = array<i64: 1, 40>}, {pipeline_mode = #tpu.pipeline_mode<synchronous>, transform_indices = @transform_5, window_bounds = array<i64: 40, 4>}, {pipeline_mode = #tpu.pipeline_mode<synchronous>, transform_indices = @transform_6, window_bounds = array<i64: 1, 4>}, {transform_indices = @transform_7, window_bounds = array<i64: 8, 4>}]} {
    %c0 = arith.constant 0 : index
    %c0_0 = arith.constant 0 : index
    %0 = vector.load %arg1[%c0, %c0_0] : memref<8x128xf32, #tpu.memory_space<vmem>>, vector<8x128xf32>
    %1 = arith.truncf %0 : vector<8x128xf32> to vector<8x128xbf16>
    %c0_1 = arith.constant 0 : index
    %c0_2 = arith.constant 0 : index
    %2 = vector.load %arg2[%c0_1, %c0_2] : memref<128x64xbf16, #tpu.memory_space<vmem>>, vector<128x64xbf16>
    %cst = arith.constant dense<0.000000e+00> : vector<8x64xf32>
    %3 = tpu.matmul %1, %2, %cst {dimension_numbers = #tpu.dot_dimension_numbers<[1], [0], [0], [1], [0, 0, 1, 1], [], []>} : vector<8x128xbf16>, vector<128x64xbf16>, vector<8x64xf32> -> vector<8x64xf32>
    %c0_3 = arith.constant 0 : index
    %c0_4 = arith.constant 0 : index
    %4 = vector.load %arg3[%c0_3, %c0_4] : memref<1x64xf32, #tpu.memory_space<vmem>>, vector<1x64xf32>
    %5 = vector.broadcast %4 : vector<1x64xf32> to vector<8x64xf32>
    %6 = arith.addf %3, %5 : vector<8x64xf32>
    %cst_5 = arith.constant 0.000000e+00 : f32
    %7 = vector.broadcast %cst_5 : f32 to vector<8x64xf32>
    %8 = arith.maximumf %6, %7 : vector<8x64xf32>
    %9 = arith.truncf %8 : vector<8x64xf32> to vector<8x64xbf16>
    %c0_6 = arith.constant 0 : index
    %c0_7 = arith.constant 0 : index
    %10 = vector.load %arg4[%c0_6, %c0_7] : memref<64x40xbf16, #tpu.memory_space<vmem>>, vector<64x40xbf16>
    %cst_8 = arith.constant dense<0.000000e+00> : vector<8x40xf32>
    %11 = tpu.matmul %9, %10, %cst_8 {dimension_numbers = #tpu.dot_dimension_numbers<[1], [0], [0], [1], [0, 0, 1, 1], [], []>} : vector<8x64xbf16>, vector<64x40xbf16>, vector<8x40xf32> -> vector<8x40xf32>
    %c0_9 = arith.constant 0 : index
    %c0_10 = arith.constant 0 : index
    %12 = vector.load %arg5[%c0_9, %c0_10] : memref<1x40xf32, #tpu.memory_space<vmem>>, vector<1x40xf32>
    %13 = vector.broadcast %12 : vector<1x40xf32> to vector<8x40xf32>
    %14 = arith.addf %11, %13 : vector<8x40xf32>
    %cst_11 = arith.constant 0.000000e+00 : f32
    %15 = vector.broadcast %cst_11 : f32 to vector<8x40xf32>
    %16 = arith.maximumf %14, %15 : vector<8x40xf32>
    %17 = arith.truncf %16 : vector<8x40xf32> to vector<8x40xbf16>
    %c0_12 = arith.constant 0 : index
    %c0_13 = arith.constant 0 : index
    %18 = vector.load %arg6[%c0_12, %c0_13] : memref<40x4xbf16, #tpu.memory_space<vmem>>, vector<40x4xbf16>
    %cst_14 = arith.constant dense<0.000000e+00> : vector<8x4xf32>
    %19 = tpu.matmul %17, %18, %cst_14 {dimension_numbers = #tpu.dot_dimension_numbers<[1], [0], [0], [1], [0, 0, 1, 1], [], []>} : vector<8x40xbf16>, vector<40x4xbf16>, vector<8x4xf32> -> vector<8x4xf32>
    %c0_15 = arith.constant 0 : index
    %c0_16 = arith.constant 0 : index
    %20 = vector.load %arg7[%c0_15, %c0_16] : memref<1x4xf32, #tpu.memory_space<vmem>>, vector<1x4xf32>
    %21 = vector.broadcast %20 : vector<1x4xf32> to vector<8x4xf32>
    %22 = arith.addf %19, %21 : vector<8x4xf32>
    %cst_17 = arith.constant 0.000000e+00 : f32
    %23 = vector.broadcast %cst_17 : f32 to vector<8x4xf32>
    %24 = arith.subf %23, %22 : vector<8x4xf32>
    %25 = math.exp %24 : vector<8x4xf32>
    %cst_18 = arith.constant 1.000000e+00 : f32
    %26 = vector.broadcast %cst_18 : f32 to vector<8x4xf32>
    %27 = arith.addf %26, %25 : vector<8x4xf32>
    %cst_19 = arith.constant 1.000000e+00 : f32
    %28 = vector.broadcast %cst_19 : f32 to vector<8x4xf32>
    %29 = arith.divf %28, %27 : vector<8x4xf32>
    %c0_20 = arith.constant 0 : index
    %c0_21 = arith.constant 0 : index
    %30 = vector.load %arg8[%c0_20, %c0_21] : memref<8x4xf32, #tpu.memory_space<vmem>>, vector<8x4xf32>
    tpu.vector_store %arg8[%c0_20, %c0_21], %29 {strides = array<i32>} : memref<8x4xf32, #tpu.memory_space<vmem>>, vector<8x4xf32>,
    return
  }
  func.func @transform_0(%arg0: i32) -> (i32, i32) {
    %c0_i32 = arith.constant 0 : i32
    %c0_i32_0 = arith.constant 0 : i32
    return %arg0, %c0_i32 : i32, i32
  }
  func.func @transform_1(%arg0: i32) -> (i32, i32) {
    %c0_i32 = arith.constant 0 : i32
    %c0_i32_0 = arith.constant 0 : i32
    %c0_i32_1 = arith.constant 0 : i32
    return %c0_i32, %c0_i32_0 : i32, i32
  }
  func.func @transform_2(%arg0: i32) -> (i32, i32) {
    %c0_i32 = arith.constant 0 : i32
    %c0_i32_0 = arith.constant 0 : i32
    %c0_i32_1 = arith.constant 0 : i32
    return %c0_i32, %c0_i32_0 : i32, i32
  }
  func.func @transform_3(%arg0: i32) -> (i32, i32) {
    %c0_i32 = arith.constant 0 : i32
    %c0_i32_0 = arith.constant 0 : i32
    %c0_i32_1 = arith.constant 0 : i32
    return %c0_i32, %c0_i32_0 : i32, i32
  }
  func.func @transform_4(%arg0: i32) -> (i32, i32) {
    %c0_i32 = arith.constant 0 : i32
    %c0_i32_0 = arith.constant 0 : i32
    %c0_i32_1 = arith.constant 0 : i32
    return %c0_i32, %c0_i32_0 : i32, i32
  }
  func.func @transform_5(%arg0: i32) -> (i32, i32) {
    %c0_i32 = arith.constant 0 : i32
    %c0_i32_0 = arith.constant 0 : i32
    %c0_i32_1 = arith.constant 0 : i32
    return %c0_i32, %c0_i32_0 : i32, i32
  }
  func.func @transform_6(%arg0: i32) -> (i32, i32) {
    %c0_i32 = arith.constant 0 : i32
    %c0_i32_0 = arith.constant 0 : i32
    %c0_i32_1 = arith.constant 0 : i32
    return %c0_i32, %c0_i32_0 : i32, i32
  }
  func.func @transform_7(%arg0: i32) -> (i32, i32) {
    %c0_i32 = arith.constant 0 : i32
    %c0_i32_0 = arith.constant 0 : i32
    return %arg0, %c0_i32 : i32, i32
  }
}

</mosaic_0001>

<llo_original>
// kernel: tpu_custom_call.1
$region0: #{tpu_custom_call.1}
  #allocation0 [shape = 'u32[]', space=smem, size = 0x4, offset = 0x4, fixed_abs, tag = 'smem constant byte address 0x4 - core index']
  #allocation1 [shape = 'u32[144,128]{1,0:T(1,128)}', space=vmem, size = 0x12000, scoped, tag = 'internal scratch']
  %s0 = inlined_call_operand.vmem [shape: f32[2,128], index: 0, kind: input, shape index: {}]
  %s1 = inlined_call_operand.vmem [shape: bf16[128,64], index: 1, kind: input, shape index: {}]
  %s2 = inlined_call_operand.vmem [shape: f32[1,64], index: 2, kind: input, shape index: {}]
  %s3 = inlined_call_operand.vmem [shape: bf16[64,40], index: 3, kind: input, shape index: {}]
  %s4 = inlined_call_operand.vmem [shape: f32[1,40], index: 4, kind: input, shape index: {}]
  %s5 = inlined_call_operand.vmem [shape: bf16[40,4], index: 5, kind: input, shape index: {}]
  %s6 = inlined_call_operand.vmem [shape: f32[1,4], index: 6, kind: input, shape index: {}]
  %s7 = inlined_call_operand.hbm [shape: f32[2,4], index: 7, kind: output, shape index: {}]
  %s8 = sld [smem:[#allocation0]]
  $region38: #{tpu_custom_call.1} parent=0
    _
  %s10 = ssub.s32 1, %s8
  %s11 = scalar_select 0, %s10, %s8
  $region1: #{tpu_custom_call.1} parent=0
    #allocation2 [shape = 'u8[4096]{0}', space=vmem, size = 0x1000, scoped, tag = 'output window, operand 0, single buffered']
    #allocation3 [shape = 's32[1]{0}', space=sflag, size = 0x4, scoped, tag = 'scoped memory for tpu_custom_call.1']
    %12 = vsyncpa [#allocation3], 0
    // Predicated region
    $region2: #{tpu_custom_call.1} parent=1 // pred_check
      _
    $region3: #{tpu_custom_call.1} parent=1 // pred_check_branch
      %14 = sbr.rel (0) target = $region5
    $region4: #{tpu_custom_call.1} parent=1 // pred_region
      _
    $region5: #{tpu_custom_call.1} parent=1 // pred_fallthru
      _
    // Predicated region
    $region6: #{tpu_custom_call.1} parent=1 // pred_check
      _
    $region7: #{tpu_custom_call.1} parent=1 // pred_check_branch
      %16 = sbr.rel (0) target = $region9
    $region8: #{tpu_custom_call.1} parent=1 // pred_region
      _
    $region9: #{tpu_custom_call.1} parent=1 // pred_fallthru
      _
    // Predicated region
    $region10: #{tpu_custom_call.1} parent=1 // pred_check
      _
    $region11: #{tpu_custom_call.1} parent=1 // pred_check_branch
      %18 = sbr.rel (0) target = $region13
    $region12: #{tpu_custom_call.1} parent=1 // pred_region
      _
    $region13: #{tpu_custom_call.1} parent=1 // pred_fallthru
      _
    // Predicated region
    $region14: #{tpu_custom_call.1} parent=1 // pred_check
      _
    $region15: #{tpu_custom_call.1} parent=1 // pred_check_branch
      %20 = sbr.rel (0) target = $region17
    $region16: #{tpu_custom_call.1} parent=1 // pred_region
      _
    $region17: #{tpu_custom_call.1} parent=1 // pred_fallthru
      _
    // Predicated region
    $region18: #{tpu_custom_call.1} parent=1 // pred_check
      _
    $region19: #{tpu_custom_call.1} parent=1 // pred_check_branch
      %22 = sbr.rel (0) target = $region21
    $region20: #{tpu_custom_call.1} parent=1 // pred_region
      _
    $region21: #{tpu_custom_call.1} parent=1 // pred_fallthru
      _
    // Predicated region
    $region22: #{tpu_custom_call.1} parent=1 // pred_check
      _
    $region23: #{tpu_custom_call.1} parent=1 // pred_check_branch
      %24 = sbr.rel (0) target = $region25
    $region24: #{tpu_custom_call.1} parent=1 // pred_region
      _
    $region25: #{tpu_custom_call.1} parent=1 // pred_fallthru
      _
    // Predicated region
    $region26: #{tpu_custom_call.1} parent=1 // pred_check
      _
    $region27: #{tpu_custom_call.1} parent=1 // pred_check_branch
      %26 = sbr.rel (0) target = $region29
    $region28: #{tpu_custom_call.1} parent=1 // pred_region
      _
    $region29: #{tpu_custom_call.1} parent=1 // pred_fallthru
      _
    %v28 = vld [vmem:[%s0] sm:$0xff]
    %v29 = vpack.c.bf16 %v28, %v28
    %v30 = vld [vmem:[%s1] sm:$0xf]
    %v31 = vld [vmem:[%s1 + $0x4] sm:$0xf]
    %v32 = vld [vmem:[%s1 + $0x8] sm:$0xf]
    %v33 = vld [vmem:[%s1 + $0xc] sm:$0xf]
    %v34 = vld [vmem:[%s1 + $0x10] sm:$0xf]
    %v35 = vld [vmem:[%s1 + $0x14] sm:$0xf]
    %v36 = vld [vmem:[%s1 + $0x18] sm:$0xf]
    %v37 = vld [vmem:[%s1 + $0x1c] sm:$0xf]
    %v38 = vld [vmem:[%s1 + $0x20] sm:$0xf]
    %v39 = vld [vmem:[%s1 + $0x24] sm:$0xf]
    %v40 = vld [vmem:[%s1 + $0x28] sm:$0xf]
    %v41 = vld [vmem:[%s1 + $0x2c] sm:$0xf]
    %v42 = vld [vmem:[%s1 + $0x30] sm:$0xf]
    %v43 = vld [vmem:[%s1 + $0x34] sm:$0xf]
    %v44 = vld [vmem:[%s1 + $0x38] sm:$0xf]
    %v45 = vld [vmem:[%s1 + $0x3c] sm:$0xf]
    %v46 = vld [vmem:[%s2] sm:$0x1]
    %v48 = vlaneseq
    %v49 = vshrl.u32 %v48, 7
    %v50 = vsub.s32 0, %v49
    %v51 = vrot.slane %v46, %v50
    %v69 = vunpack.c.l.b16 %v30
    %v70 = vunpack.c.l.b16 %v31
    %v71 = vunpack.c.l.b16 %v32
    %v72 = vunpack.c.l.b16 %v33
    %v73 = vunpack.c.l.b16 %v34
    %v74 = vunpack.c.l.b16 %v35
    %v75 = vunpack.c.l.b16 %v36
    %v76 = vunpack.c.l.b16 %v37
    %v77 = vunpack.c.l.b16 %v38
    %v78 = vunpack.c.l.b16 %v39
    %v79 = vunpack.c.l.b16 %v40
    %v80 = vunpack.c.l.b16 %v41
    %v81 = vunpack.c.l.b16 %v42
    %v82 = vunpack.c.l.b16 %v43
    %v83 = vunpack.c.l.b16 %v44
    %v84 = vunpack.c.l.b16 %v45
    %v85 = vpack.c.b16 %v70, %v69
    %v86 = vpack.c.b16 %v72, %v71
    %v87 = vpack.c.b16 %v74, %v73
    %v88 = vpack.c.b16 %v76, %v75
    %v89 = vpack.c.b16 %v78, %v77
    %v90 = vpack.c.b16 %v80, %v79
    %v91 = vpack.c.b16 %v82, %v81
    %v92 = vpack.c.b16 %v84, %v83
    %101 = vmatprep.subr.bf16.mxu0 0
    %102 = vmatpush1.bf16.msra.mxu0 %v92
    %103 = vmatprep.subr.bf16.mxu0 0
    %104 = vmatpush1.bf16.msra.mxu0 %v91
    %105 = vmatprep.subr.bf16.mxu0 0
    %106 = vmatpush1.bf16.msra.mxu0 %v90
    %107 = vmatprep.subr.bf16.mxu0 0
    %108 = vmatpush1.bf16.msra.mxu0 %v89
    %109 = vmatprep.subr.bf16.mxu0 0
    %110 = vmatpush1.bf16.msra.mxu0 %v88
    %111 = vmatprep.subr.bf16.mxu0 0
    %112 = vmatpush1.bf16.msra.mxu0 %v87
    %113 = vmatprep.subr.bf16.mxu0 0
    %114 = vmatpush1.bf16.msra.mxu0 %v86
    %115 = vmatprep.subr.bf16.mxu0 0
    %116 = vmatpush1.bf16.msra.mxu0 %v85
    %117 = vmatprep.subr.bf16.mxu0 0
    %118 = vmatpush2.bf16.msra.mxu0 0
    %119 = vmatprep.subr.bf16.mxu0 0
    %120 = vmatpush2.bf16.msra.mxu0 0
    %121 = vmatprep.subr.bf16.mxu0 0
    %122 = vmatpush2.bf16.msra.mxu0 0
    %123 = vmatprep.subr.bf16.mxu0 0
    %124 = vmatpush2.bf16.msra.mxu0 0
    %125 = vmatprep.subr.bf16.mxu0 0
    %126 = vmatpush2.bf16.msra.mxu0 0
    %127 = vmatprep.subr.bf16.mxu0 0
    %128 = vmatpush2.bf16.msra.mxu0 0
    %129 = vmatprep.subr.bf16.mxu0 0
    %130 = vmatpush2.bf16.msra.mxu0 0
    %131 = vmatprep.subr.bf16.mxu0 0
    %132 = vmatpush2.bf16.msra.mxu0 0
    %133 = vmatprep.mubr.bf16.mxu0 0
    %134 = vmatmul.mubr.bf16.gmra.mxu0 %v29
    %v135 = vpop.f32.mrf.mxu0
    %v136 = vadd.f32 %v51, %v135
    %v137 = vpop.f32.mrf.mxu0
    %v138 = vpop.f32.mrf.mxu0
    %v139 = vpop.f32.mrf.mxu0
    %140 = vdwg.mxu0
    %v141 = vmax.f32 %v136, 0.0
    %v142 = vpack.c.bf16 %v141, %v141
    %v143 = vld [vmem:[%s3] sm:$0xf]
    %v144 = vld [vmem:[%s3 + $0x4] sm:$0xf]
    %v145 = vld [vmem:[%s3 + $0x8] sm:$0xf]
    %v146 = vld [vmem:[%s3 + $0xc] sm:$0xf]
    %v147 = vld [vmem:[%s3 + $0x10] sm:$0xf]
    %v148 = vld [vmem:[%s3 + $0x14] sm:$0xf]
    %v149 = vld [vmem:[%s3 + $0x18] sm:$0xf]
    %v150 = vld [vmem:[%s3 + $0x1c] sm:$0xf]
    %v151 = vld [vmem:[%s4] sm:$0x1]
    %v153 = vlaneseq
    %v154 = vshrl.u32 %v153, 7
    %v155 = vsub.s32 0, %v154
    %v156 = vrot.slane %v151, %v155
    %v166 = vunpack.c.l.b16 %v143
    %v167 = vunpack.c.l.b16 %v144
    %v168 = vunpack.c.l.b16 %v145
    %v169 = vunpack.c.l.b16 %v146
    %v170 = vunpack.c.l.b16 %v147
    %v171 = vunpack.c.l.b16 %v148
    %v172 = vunpack.c.l.b16 %v149
    %v173 = vunpack.c.l.b16 %v150
    %v174 = vpack.c.b16 %v167, %v166
    %v175 = vpack.c.b16 %v169, %v168
    %v176 = vpack.c.b16 %v171, %v170
    %v177 = vpack.c.b16 %v173, %v172
    %vm182 = vcmask 523264
    %v184 = vsel %vm182, %v142, 0
    %186 = vmatprep.subr.bf16.mxu0 0
    %187 = vmatpush1.bf16.msra.mxu0 0
    %188 = vmatprep.subr.bf16.mxu0 0
    %189 = vmatpush1.bf16.msra.mxu0 0
    %190 = vmatprep.subr.bf16.mxu0 0
    %191 = vmatpush1.bf16.msra.mxu0 0
    %192 = vmatprep.subr.bf16.mxu0 0
    %193 = vmatpush1.bf16.msra.mxu0 0
    %194 = vmatprep.subr.bf16.mxu0 0
    %195 = vmatpush1.bf16.msra.mxu0 %v177
    %196 = vmatprep.subr.bf16.mxu0 0
    %197 = vmatpush1.bf16.msra.mxu0 %v176
    %198 = vmatprep.subr.bf16.mxu0 0
    %199 = vmatpush1.bf16.msra.mxu0 %v175
    %200 = vmatprep.subr.bf16.mxu0 0
    %201 = vmatpush1.bf16.msra.mxu0 %v174
    %202 = vmatprep.subr.bf16.mxu0 0
    %203 = vmatpush2.bf16.msra.mxu0 0
    %204 = vmatprep.subr.bf16.mxu0 0
    %205 = vmatpush2.bf16.msra.mxu0 0
    %206 = vmatprep.subr.bf16.mxu0 0
    %207 = vmatpush2.bf16.msra.mxu0 0
    %208 = vmatprep.subr.bf16.mxu0 0
    %209 = vmatpush2.bf16.msra.mxu0 0
    %210 = vmatprep.subr.bf16.mxu0 0
    %211 = vmatpush2.bf16.msra.mxu0 0
    %212 = vmatprep.subr.bf16.mxu0 0
    %213 = vmatpush2.bf16.msra.mxu0 0
    %214 = vmatprep.subr.bf16.mxu0 0
    %215 = vmatpush2.bf16.msra.mxu0 0
    %216 = vmatprep.subr.bf16.mxu0 0
    %217 = vmatpush2.bf16.msra.mxu0 0
    %218 = vmatprep.mubr.bf16.mxu0 0
    %219 = vmatmul.mubr.bf16.gmra.mxu0 %v184
    %v220 = vpop.f32.mrf.mxu0
    %v221 = vadd.f32 %v156, %v220
    %v222 = vpop.f32.mrf.mxu0
    %v223 = vpop.f32.mrf.mxu0
    %v224 = vpop.f32.mrf.mxu0
    %225 = vdwg.mxu0
    %v226 = vmax.f32 %v221, 0.0
    %v227 = vpack.c.bf16 %v226, %v226
    %v228 = vld [vmem:[%s5] sm:$0xf]
    %v229 = vld [vmem:[%s5 + $0x4] sm:$0xf]
    %v230 = vld [vmem:[%s5 + $0x8] sm:$0xf]
    %v231 = vld [vmem:[%s5 + $0xc] sm:$0xf]
    %v232 = vld [vmem:[%s5 + $0x10] sm:$0xf]
    %v233 = vld [vmem:[%s6] sm:$0x1]
    %v235 = vlaneseq
    %v236 = vshrl.u32 %v235, 7
    %v237 = vsub.s32 0, %v236
    %v238 = vrot.slane %v233, %v237
    %v245 = vunpack.c.l.b16 %v228
    %v246 = vunpack.c.l.b16 %v229
    %v247 = vunpack.c.l.b16 %v230
    %v248 = vunpack.c.l.b16 %v231
    %v249 = vunpack.c.l.b16 %v232
    %v250 = vpack.c.b16 %v246, %v245
    %v251 = vpack.c.b16 %v248, %v247
    %v252 = vpack.c.b16 %v249, %v249
    %vm255 = vcmask 326656
    %v257 = vsel %vm255, %v227, 0
    %vm259 = vcmask 1043456
    %v261 = vsel %vm259, %v252, 0
    %263 = vmatprep.subr.bf16.mxu0 0
    %264 = vmatpush1.bf16.msra.mxu0 0
    %265 = vmatprep.subr.bf16.mxu0 0
    %266 = vmatpush1.bf16.msra.mxu0 0
    %267 = vmatprep.subr.bf16.mxu0 0
    %268 = vmatpush1.bf16.msra.mxu0 0
    %269 = vmatprep.subr.bf16.mxu0 0
    %270 = vmatpush1.bf16.msra.mxu0 0
    %271 = vmatprep.subr.bf16.mxu0 0
    %272 = vmatpush1.bf16.msra.mxu0 0
    %273 = vmatprep.subr.bf16.mxu0 0
    %274 = vmatpush1.bf16.msra.mxu0 %v261
    %275 = vmatprep.subr.bf16.mxu0 0
    %276 = vmatpush1.bf16.msra.mxu0 %v251
    %277 = vmatprep.subr.bf16.mxu0 0
    %278 = vmatpush1.bf16.msra.mxu0 %v250
    %279 = vmatprep.subr.bf16.mxu0 0
    %280 = vmatpush2.bf16.msra.mxu0 0
    %281 = vmatprep.subr.bf16.mxu0 0
    %282 = vmatpush2.bf16.msra.mxu0 0
    %283 = vmatprep.subr.bf16.mxu0 0
    %284 = vmatpush2.bf16.msra.mxu0 0
    %285 = vmatprep.subr.bf16.mxu0 0
    %286 = vmatpush2.bf16.msra.mxu0 0
    %287 = vmatprep.subr.bf16.mxu0 0
    %288 = vmatpush2.bf16.msra.mxu0 0
    %289 = vmatprep.subr.bf16.mxu0 0
    %290 = vmatpush2.bf16.msra.mxu0 0
    %291 = vmatprep.subr.bf16.mxu0 0
    %292 = vmatpush2.bf16.msra.mxu0 0
    %293 = vmatprep.subr.bf16.mxu0 0
    %294 = vmatpush2.bf16.msra.mxu0 0
    %295 = vmatprep.mubr.bf16.mxu0 0
    %296 = vmatmul.mubr.bf16.gmra.mxu0 %v257
    %v297 = vpop.f32.mrf.mxu0
    %v298 = vadd.f32 %v238, %v297
    %v299 = vpop.f32.mrf.mxu0
    %v300 = vpop.f32.mrf.mxu0
    %v301 = vpop.f32.mrf.mxu0
    %302 = vdwg.mxu0
    %v303 = vsub.f32 0.0, %v298
    %v304 = vmul.f32 %v303, 1.442695
    %v305 = vpow.pop %v304
    %v306 = vadd.f32 %v305, 1.0
    %v307 = vrcp.pop %v306
    %v308 = vmul.f32 1.0, %v307
    %vm309 = vcmask 31744
    %310 = vst.msk [vmem:[#allocation2] sm:$0xff] %vm309, %v308
    // Predicated region
    $region30: #{tpu_custom_call.1} parent=1 // pred_check
      _
    $region31: #{tpu_custom_call.1} parent=1 // pred_check_branch
      %312 = sbr.rel (0) target = $region33
    $region32: #{tpu_custom_call.1} parent=1 // pred_region
      %s314 = ssub.s32 128, 32
      %315 = vsyncadd [#allocation3], %s314
      %s316 = sshll.u32 [#allocation2], 4
      %s317 = int_to_ptr.vmem [resolvable:$true] %s316
      %322 = dma.vmem_to_hbm [thread:$0]  %s317, 32, %s7, [#allocation3], 32, 32, 2
    $region33: #{tpu_custom_call.1} parent=1 // pred_fallthru
      _
    // Predicated region
    $region34: #{tpu_custom_call.1} parent=1 // pred_check
      _
    $region35: #{tpu_custom_call.1} parent=1 // pred_check_branch
      %324 = sbr.rel (0) target = $region37
    $region36: #{tpu_custom_call.1} parent=1 // pred_region
      %325 = dma.done [#allocation3], 128
    $region37: #{tpu_custom_call.1} parent=1 // pred_fallthru
      _
    %326 = vsyncpa [#allocation3], 1

</llo_original>
